<compile_context>
chip_gen: v5e
topology: v5e:2x2
jax: 0.10.0
libtpu: 0.0.40
codegen_flags: <defaults>
</compile_context>

<pallas_src>
import functools

import jax
import jax.numpy as jnp
from jax.experimental import pallas as pl
from jax.experimental.pallas import tpu as pltpu


def _round_up(v, m):
    return ((v + m - 1) // m) * m


def _pinn_kernel(x_ref, p_ref, w2_ref, b3_ref, o_ref, *, use_bf16_mxu):
    # x_ref : (1, 1, TILE_N)  batch tile (lane-dense)
    # p_ref : (H, 4)          packed columns [w1, b1, b2, w3]
    # w2_ref: (H, H)          torch orientation (out_features, in_features)
    # b3_ref: (1, 1)          SMEM scalar
    # o_ref : (1, 1, TILE_N)
    x = x_ref[0]                      # (1, TILE_N)

    p = p_ref[...]                    # (H, 4) — single load, slice the value
    w1 = p[:, 0:1]                    # (H, 1)
    b1 = p[:, 1:2]
    b2 = p[:, 2:3]
    w3 = p[:, 3:4]

    # Layer 1: Linear(1 -> H) + ReLU.  K=1 contraction -> pure VPU broadcast.
    h = jnp.maximum(w1 * x + b1, 0.0)                              # (H, TILE_N) f32

    # Layer 2: Linear(H -> H) + ReLU.  The only real matmul -> MXU.
    if use_bf16_mxu:
        h2 = jnp.dot(w2_ref[...].astype(jnp.bfloat16),
                     h.astype(jnp.bfloat16),
                     preferred_element_type=jnp.float32)
    else:
        h2 = jnp.dot(w2_ref[...], h, preferred_element_type=jnp.float32)
    h2 = jnp.maximum(h2 + b2, 0.0)                                 # (H, TILE_N) f32

    # Layer 3: Linear(H -> 1).  N=1 matmul -> VPU multiply + sublane reduce (XLU).
    out = jnp.sum(h2 * w3, axis=0, keepdims=True) + b3_ref[0, 0]   # (1, TILE_N)

    o_ref[0] = out.astype(o_ref.dtype)


@functools.partial(jax.jit, static_argnames=("tile_n", "use_bf16_mxu"))
def pinn_forward(x, w1, b1, w2, b2, w3, b3, *, tile_n=2048, use_bf16_mxu=True):
    """Forward pass of the default PINN (n_layers=2, neurons=64, ReLU).

    Arguments are in PyTorch nn.Linear orientation:
      x : (N, 1)             w1: (neurons, 1)        b1: (neurons,)
      w2: (neurons, neurons) b2: (neurons,)
      w3: (1, neurons)       b3: (1,)
    Returns (N, 1) float32.
    """
    assert tile_n % 128 == 0, "tile_n must be a multiple of 128 (lane width)"
    n = x.shape[0]
    neurons = w1.shape[0]
    # Sublane-align the hidden dim (64 is already aligned; no 128 pad needed —
    # weight blocks equal the full array so the (8,128) rule is satisfied).
    h_pad = _round_up(max(neurons, 8), 8)

    # --- Pack the (H,) parameter vectors into one (H, 4) array. -------------
    def col(v):
        v = v.reshape(neurons).astype(jnp.float32)
        if h_pad != neurons:
            v = jnp.pad(v, (0, h_pad - neurons))
        return v

    params4 = jnp.stack(
        [col(w1), col(b1), col(b2), col(w3.reshape(neurons))], axis=1)   # (H, 4)
    w2_k = w2.astype(jnp.float32)
    if h_pad != neurons:
        w2_k = jnp.pad(w2_k, ((0, h_pad - neurons), (0, h_pad - neurons)))
    b3_k = b3.reshape(1, 1).astype(jnp.float32)

    # --- Tile choice: large tiles, but keep >= 2 grid steps when n allows so
    # both v7x TensorCores get work (grid axis is "parallel"). ----------------
    half = _round_up(-(-n // 2), 128)
    tile = max(128, min(tile_n, half))
    num_tiles = -(-n // tile)
    n_pad = num_tiles * tile

    # --- Lay the batch out lane-dense: (tiles, 1, tile).  Skip the pad/copy
    # when n already divides the tile. ----------------------------------------
    x_flat = x.reshape(n).astype(jnp.float32)
    if n_pad != n:
        x_flat = jnp.pad(x_flat, (0, n_pad - n))
    x_tiles = x_flat.reshape(num_tiles, 1, tile)

    flops = n_pad * (2 * h_pad * h_pad + 6 * h_pad)
    bytes_accessed = 4 * (2 * n_pad + h_pad * h_pad + 4 * h_pad + 1)

    out = pl.pallas_call(
        functools.partial(_pinn_kernel, use_bf16_mxu=use_bf16_mxu),
        out_shape=jax.ShapeDtypeStruct((num_tiles, 1, tile), jnp.float32),
        grid_spec=pltpu.PrefetchScalarGridSpec(
            num_scalar_prefetch=0,
            grid=(num_tiles,),
            in_specs=[
                pl.BlockSpec((1, 1, tile), lambda i: (i, 0, 0)),      # x tile
                pl.BlockSpec((h_pad, 4), lambda i: (0, 0)),           # packed w1/b1/b2/w3
                pl.BlockSpec((h_pad, h_pad), lambda i: (0, 0)),       # w2
                pl.BlockSpec(memory_space=pltpu.MemorySpace.SMEM),    # b3 scalar
            ],
            out_specs=pl.BlockSpec((1, 1, tile), lambda i: (i, 0, 0)),
        ),
        compiler_params=pltpu.CompilerParams(
            dimension_semantics=("parallel",),
        ),
        cost_estimate=pl.CostEstimate(
            flops=flops, transcendentals=0, bytes_accessed=bytes_accessed),
    )(x_tiles, params4, w2_k, b3_k)

    out = out.reshape(n_pad, 1)
    if n_pad != n:
        out = out[:n]
    return out


# ---------------------------------------------------------------------------
# Parameter init matching the PyTorch module (xavier_uniform_ weights,
# default nn.Linear bias init), in torch (out_features, in_features) layout.
# ---------------------------------------------------------------------------
def _xavier_uniform(key, out_features, in_features):
    limit = float(jnp.sqrt(6.0 / (in_features + out_features)))
    return jax.random.uniform(key, (out_features, in_features),
                              minval=-limit, maxval=limit, dtype=jnp.float32)


def _default_bias(key, out_features, in_features):
    bound = 1.0 / float(jnp.sqrt(jnp.float32(in_features)))
    return jax.random.uniform(key, (out_features,),
                              minval=-bound, maxval=bound, dtype=jnp.float32)


def init_pinn_params(key, n_layers=2, neurons=64):
    # TODO(synk): only the default n_layers=2 (two hidden layers) config is built.
    assert n_layers == 2, "kernel materializes the default n_layers=2 config"
    ks = jax.random.split(key, 6)
    w1 = _xavier_uniform(ks[0], neurons, 1)
    b1 = _default_bias(ks[1], neurons, 1)
    w2 = _xavier_uniform(ks[2], neurons, neurons)
    b2 = _default_bias(ks[3], neurons, neurons)
    w3 = _xavier_uniform(ks[4], 1, neurons)
    b3 = _default_bias(ks[5], 1, neurons)
    return w1, b1, w2, b2, w3, b3


def pinn_forward_ref(x, w1, b1, w2, b2, w3, b3):
    # TODO(synk): 'tanh' activation variant not implemented (default config is ReLU).
    h = jnp.maximum(x @ w1.T + b1, 0.0)
    h = jnp.maximum(h @ w2.T + b2, 0.0)
    return h @ w3.T + b3


if __name__ == "__main__":
    key = jax.random.PRNGKey(0)
    k_param, k_x = jax.random.split(key)

    neurons = 64
    n = 1000  # ragged batch of collocation points (exercises pad + 2-tile grid)
    params = init_pinn_params(k_param, n_layers=2, neurons=neurons)

    x = jax.random.uniform(k_x, (n, 1), dtype=jnp.float32)  # t in [0, 1)

    ref = pinn_forward_ref(x, *params)

    # Exact f32 MXU path.
    out_f32 = jax.block_until_ready(pinn_forward(x, *params, use_bf16_mxu=False))
    assert out_f32.shape == (n, 1)
    assert jnp.allclose(out_f32, ref, atol=1e-4, rtol=1e-5), "f32 mismatch vs reference"

    # Fast bf16-MXU path (f32 accumulation) — looser tolerance.
    out_bf16 = jax.block_until_ready(pinn_forward(x, *params, use_bf16_mxu=True))
    assert out_bf16.shape == (n, 1)
    assert jnp.allclose(out_bf16, ref, atol=5e-2, rtol=5e-2), "bf16 mismatch vs reference"

    print("KERNEL_OK")
</pallas_src>

<mosaic_0001>
module attributes {stable_mosaic.version = 11 : i64} {
  func.func @_pinn_kernel(%arg0: i32, %arg1: memref<1x1x512xf32, #tpu.memory_space<vmem>>, %arg2: memref<64x4xf32, #tpu.memory_space<vmem>>, %arg3: memref<64x64xf32, #tpu.memory_space<vmem>>, %arg4: memref<1x1xf32, #tpu.memory_space<smem>>, %arg5: memref<1x1x512xf32, #tpu.memory_space<vmem>>) attributes {dimension_semantics = [#tpu.dimension_semantics<parallel>], iteration_bounds = array<i64: 2>, scalar_prefetch = 0 : i64, scratch_operands = 0 : i64, tpu.core_type = #tpu.core_type<tc>, window_params = [{transform_indices = @transform_0, window_bounds = array<i64: 1, 1, 512>}, {pipeline_mode = #tpu.pipeline_mode<synchronous>, transform_indices = @transform_1, window_bounds = array<i64: 64, 4>}, {pipeline_mode = #tpu.pipeline_mode<synchronous>, transform_indices = @transform_2, window_bounds = array<i64: 64, 64>}, {transform_indices = @transform_3, window_bounds = array<i64: 1, 1>}, {transform_indices = @transform_4, window_bounds = array<i64: 1, 1, 512>}]} {
    %c0 = arith.constant 0 : index
    %c0_0 = arith.constant 0 : index
    %c0_1 = arith.constant 0 : index
    %0 = vector.load %arg1[%c0, %c0_0, %c0_1] : memref<1x1x512xf32, #tpu.memory_space<vmem>>, vector<1x1x512xf32>
    %1 = vector.shape_cast %0 : vector<1x1x512xf32> to vector<1x512xf32>
    %c0_2 = arith.constant 0 : index
    %c0_3 = arith.constant 0 : index
    %2 = vector.load %arg2[%c0_2, %c0_3] : memref<64x4xf32, #tpu.memory_space<vmem>>, vector<64x4xf32>
    %3 = vector.extract_strided_slice %2 {offsets = [0, 0], sizes = [64, 1], strides = [1, 1]} : vector<64x4xf32> to vector<64x1xf32>
    %4 = vector.extract_strided_slice %2 {offsets = [0, 1], sizes = [64, 1], strides = [1, 1]} : vector<64x4xf32> to vector<64x1xf32>
    %5 = vector.extract_strided_slice %2 {offsets = [0, 2], sizes = [64, 1], strides = [1, 1]} : vector<64x4xf32> to vector<64x1xf32>
    %6 = vector.extract_strided_slice %2 {offsets = [0, 3], sizes = [64, 1], strides = [1, 1]} : vector<64x4xf32> to vector<64x1xf32>
    %7 = vector.broadcast %3 : vector<64x1xf32> to vector<64x512xf32>
    %8 = vector.broadcast %1 : vector<1x512xf32> to vector<64x512xf32>
    %9 = arith.mulf %7, %8 : vector<64x512xf32>
    %10 = vector.broadcast %4 : vector<64x1xf32> to vector<64x512xf32>
    %11 = arith.addf %9, %10 : vector<64x512xf32>
    %cst = arith.constant 0.000000e+00 : f32
    %12 = vector.broadcast %cst : f32 to vector<64x512xf32>
    %13 = arith.maximumf %11, %12 : vector<64x512xf32>
    %c0_4 = arith.constant 0 : index
    %c0_5 = arith.constant 0 : index
    %14 = vector.load %arg3[%c0_4, %c0_5] : memref<64x64xf32, #tpu.memory_space<vmem>>, vector<64x64xf32>
    %cst_6 = arith.constant dense<0.000000e+00> : vector<64x512xf32>
    %15 = tpu.matmul %14, %13, %cst_6 {dimension_numbers = #tpu.dot_dimension_numbers<[1], [0], [0], [1], [0, 0, 1, 1], [], []>} : vector<64x64xf32>, vector<64x512xf32>, vector<64x512xf32> -> vector<64x512xf32>
    %16 = vector.broadcast %5 : vector<64x1xf32> to vector<64x512xf32>
    %17 = arith.addf %15, %16 : vector<64x512xf32>
    %cst_7 = arith.constant 0.000000e+00 : f32
    %18 = vector.broadcast %cst_7 : f32 to vector<64x512xf32>
    %19 = arith.maximumf %17, %18 : vector<64x512xf32>
    %20 = vector.broadcast %6 : vector<64x1xf32> to vector<64x512xf32>
    %21 = arith.mulf %19, %20 : vector<64x512xf32>
    %cst_8 = arith.constant dense<0.000000e+00> : vector<512xf32>
    %22 = vector.multi_reduction <add>, %21, %cst_8 [0] : vector<64x512xf32> to vector<512xf32>
    %23 = vector.shape_cast %22 : vector<512xf32> to vector<1x512xf32>
    %c0_9 = arith.constant 0 : index
    %c0_10 = arith.constant 0 : index
    %24 = memref.load %arg4[%c0_9, %c0_10] : memref<1x1xf32, #tpu.memory_space<smem>>
    %25 = vector.broadcast %24 : f32 to vector<1x512xf32>
    %26 = arith.addf %23, %25 : vector<1x512xf32>
    %c0_11 = arith.constant 0 : index
    %c0_12 = arith.constant 0 : index
    %c0_13 = arith.constant 0 : index
    %27 = vector.load %arg5[%c0_11, %c0_12, %c0_13] : memref<1x1x512xf32, #tpu.memory_space<vmem>>, vector<1x1x512xf32>
    %28 = vector.shape_cast %27 : vector<1x1x512xf32> to vector<1x512xf32>
    %29 = vector.shape_cast %26 : vector<1x512xf32> to vector<1x1x512xf32>
    tpu.vector_store %arg5[%c0_11, %c0_12, %c0_13], %29 {strides = array<i32>} : memref<1x1x512xf32, #tpu.memory_space<vmem>>, vector<1x1x512xf32>,
    return
  }
  func.func @transform_0(%arg0: i32) -> (i32, i32, i32) {
    %c0_i32 = arith.constant 0 : i32
    %c0_i32_0 = arith.constant 0 : i32
    %c0_i32_1 = arith.constant 0 : i32
    return %arg0, %c0_i32, %c0_i32_0 : i32, i32, i32
  }
  func.func @transform_1(%arg0: i32) -> (i32, i32) {
    %c0_i32 = arith.constant 0 : i32
    %c0_i32_0 = arith.constant 0 : i32
    %c0_i32_1 = arith.constant 0 : i32
    return %c0_i32, %c0_i32_0 : i32, i32
  }
  func.func @transform_2(%arg0: i32) -> (i32, i32) {
    %c0_i32 = arith.constant 0 : i32
    %c0_i32_0 = arith.constant 0 : i32
    %c0_i32_1 = arith.constant 0 : i32
    return %c0_i32, %c0_i32_0 : i32, i32
  }
  func.func @transform_3(%arg0: i32) -> (i32, i32) {
    %c0_i32 = arith.constant 0 : i32
    %c0_i32_0 = arith.constant 0 : i32
    %c0_i32_1 = arith.constant 0 : i32
    return %c0_i32, %c0_i32_0 : i32, i32
  }
  func.func @transform_4(%arg0: i32) -> (i32, i32, i32) {
    %c0_i32 = arith.constant 0 : i32
    %c0_i32_0 = arith.constant 0 : i32
    %c0_i32_1 = arith.constant 0 : i32
    return %arg0, %c0_i32, %c0_i32_0 : i32, i32, i32
  }
}

</mosaic_0001>

<llo_original>
// kernel: pinn_forward.1
$region0: #{pinn_forward.1}
  #allocation0 [shape = 'u32[]', space=smem, size = 0x4, offset = 0x4, fixed_abs, tag = 'smem constant byte address 0x4 - core index']
  #allocation1 [shape = 'u32[72,128]{1,0:T(1,128)}', space=vmem, size = 0x9000, scoped, tag = 'internal scratch']
  #allocation2 [shape = 'f32[1,1]{1,0:T(1,128)S(6)}', space=smem, size = 0x200, scoped, tag = 'scoped memory for pinn_forward.1']
  %s0 = inlined_call_operand.vmem [shape: f32[2,1,512], index: 0, kind: input, shape index: {}]
  %s1 = inlined_call_operand.vmem [shape: f32[64,4], index: 1, kind: input, shape index: {}]
  %s2 = inlined_call_operand.vmem [shape: f32[64,64], index: 2, kind: input, shape index: {}]
  %s3 = inlined_call_operand.<no memory space> [shape: f32[1,1], index: 3, kind: input, shape index: {}]
  %s4 = inlined_call_operand.hbm [shape: f32[2,1,512], index: 4, kind: output, shape index: {}]
  %s5 = sld [smem:[#allocation0]]
  $region49: #{pinn_forward.1} parent=0
    _
  %s7 = ssub.s32 1, %s5
  %s8 = scalar_select 0, %s7, %s5
  %9 = sst [smem:[#allocation2]] %s3
  $region1: #{pinn_forward.1} parent=0
    #allocation3 [shape = 'u8[4096]{0}', space=vmem, size = 0x1000, scoped, tag = 'output window, operand 0']
    #allocation4 [shape = 's32[2]{0}', space=sflag, size = 0x8, scoped, tag = 'scoped memory for pinn_forward.1']
    %10 = vsyncpa [#allocation4], 0
    %s11 = scalar_lea.sflag [#allocation4], 1
    %12 = vsyncpa %s11, 0
    loop: start=0, step=1, limit=4
    $region2: #{pinn_forward.1} parent=1 // loop_pre_header
      _
    $region3: #{pinn_forward.1} parent=1 // loop_header
      %s14 = sphi 0, %s18
      %p15 = scmp.ge.s32.totalorder %s14, 4
      %s24 = sphi 0, %s26
      %s27 = sphi 0, %s24
      %s28 = sphi 0, %s27
      %s44 = sphi 0, %s28
      %s48 = sphi 0, %s48
      %s50 = sphi 0, %s48
      %s51 = sphi 0, %s50
      %s65 = sphi 0, %s51
      %s69 = sphi 0, %s69
      %s71 = sphi 0, %s69
      %s72 = sphi 0, %s71
      %s86 = sphi 0, %s72
      %s90 = sphi 0, %s90
      %s92 = sphi 0, %s90
      %s93 = sphi 0, %s92
      %s107 = sphi 0, %s93
      %s113 = sphi 0, %s115
      %s116 = sphi 0, %s113
      %s117 = sphi 0, %s116
      %s133 = sphi 0, %s117
    $region4: #{pinn_forward.1} parent=1 // loop_header_branch
      %17 = sbr.rel (%p15) target = $region8
    $region5: #{pinn_forward.1} parent=1 // loop_body
      %s19 = ssub.s32 %s14, 1
      %s20 = ssub.s32 %s14, 2
      %s21 = sadd.s32 %s14, 1
      %s22 = ssub.s32 %s14, %s21
      %p23 = scmp.eq.s32.totalorder %s22, 0
      %s25 = sadd.s32 %s24, 1
      %s26 = scalar_select %p23, %s24, %s25
      %p29 = pneg %p23
      %p30 = scmp.eq.s32.totalorder %s14, 1
      %p31 = por %p29, %p30
      %p32 = scmp.ne.s32.totalorder %s24, %s27
      %p33 = scmp.eq.s32.totalorder %s14, 0
      %p34 = por %p32, %p33
      %p35 = scmp.ne.s32.totalorder %s24, %s27
      %p36 = scmp.eq.s32.totalorder %s19, 1
      %p37 = por %p35, %p36
      %p38 = scmp.ne.s32.totalorder %s27, %s28
      %p39 = scmp.eq.s32.totalorder %s19, 0
      %p40 = por %p38, %p39
      %p41 = scmp.ne.s32.totalorder %s27, %s28
      %p42 = scmp.eq.s32.totalorder %s20, 1
      %p43 = por %p41, %p42
      %p45 = scmp.ne.s32.totalorder %s28, %s44
      %p46 = scmp.eq.s32.totalorder %s20, 0
      %p47 = por %p45, %p46
      %s49 = sadd.s32 %s48, 1
      %p52 = scmp.eq.s32.totalorder %s14, 1
      %p53 = scmp.ne.s32.totalorder %s48, %s50
      %p54 = scmp.eq.s32.totalorder %s14, 0
      %p55 = por %p53, %p54
      %p56 = scmp.ne.s32.totalorder %s48, %s50
      %p57 = scmp.eq.s32.totalorder %s19, 1
      %p58 = por %p56, %p57
      %p59 = scmp.ne.s32.totalorder %s50, %s51
      %p60 = scmp.eq.s32.totalorder %s19, 0
      %p61 = por %p59, %p60
      %p62 = scmp.ne.s32.totalorder %s50, %s51
      %p63 = scmp.eq.s32.totalorder %s20, 1
      %p64 = por %p62, %p63
      %p66 = scmp.ne.s32.totalorder %s51, %s65
      %p67 = scmp.eq.s32.totalorder %s20, 0
      %p68 = por %p66, %p67
      %s70 = sadd.s32 %s69, 1
      %p73 = scmp.eq.s32.totalorder %s14, 1
      %p74 = scmp.ne.s32.totalorder %s69, %s71
      %p75 = scmp.eq.s32.totalorder %s14, 0
      %p76 = por %p74, %p75
      %p77 = scmp.ne.s32.totalorder %s69, %s71
      %p78 = scmp.eq.s32.totalorder %s19, 1
      %p79 = por %p77, %p78
      %p80 = scmp.ne.s32.totalorder %s71, %s72
      %p81 = scmp.eq.s32.totalorder %s19, 0
      %p82 = por %p80, %p81
      %p83 = scmp.ne.s32.totalorder %s71, %s72
      %p84 = scmp.eq.s32.totalorder %s20, 1
      %p85 = por %p83, %p84
      %p87 = scmp.ne.s32.totalorder %s72, %s86
      %p88 = scmp.eq.s32.totalorder %s20, 0
      %p89 = por %p87, %p88
      %s91 = sadd.s32 %s90, 1
      %p94 = scmp.eq.s32.totalorder %s14, 1
      %p95 = scmp.ne.s32.totalorder %s90, %s92
      %p96 = scmp.eq.s32.totalorder %s14, 0
      %p97 = por %p95, %p96
      %p98 = scmp.ne.s32.totalorder %s90, %s92
      %p99 = scmp.eq.s32.totalorder %s19, 1
      %p100 = por %p98, %p99
      %p101 = scmp.ne.s32.totalorder %s92, %s93
      %p102 = scmp.eq.s32.totalorder %s19, 0
      %p103 = por %p101, %p102
      %p104 = scmp.ne.s32.totalorder %s92, %s93
      %p105 = scmp.eq.s32.totalorder %s20, 1
      %p106 = por %p104, %p105
      %p108 = scmp.ne.s32.totalorder %s93, %s107
      %p109 = scmp.eq.s32.totalorder %s20, 0
      %p110 = por %p108, %p109
      %s111 = ssub.s32 %s14, %s21
      %p112 = scmp.eq.s32.totalorder %s111, 0
      %s114 = sadd.s32 %s113, 1
      %s115 = scalar_select %p112, %s113, %s114
      %p118 = pneg %p112
      %p119 = scmp.eq.s32.totalorder %s14, 1
      %p120 = por %p118, %p119
      %p121 = scmp.ne.s32.totalorder %s113, %s116
      %p122 = scmp.eq.s32.totalorder %s14, 0
      %p123 = por %p121, %p122
      %p124 = scmp.ne.s32.totalorder %s113, %s116
      %p125 = scmp.eq.s32.totalorder %s19, 1
      %p126 = por %p124, %p125
      %p127 = scmp.ne.s32.totalorder %s116, %s117
      %p128 = scmp.eq.s32.totalorder %s19, 0
      %p129 = por %p127, %p128
      %p130 = scmp.ne.s32.totalorder %s116, %s117
      %p131 = scmp.eq.s32.totalorder %s20, 1
      %p132 = por %p130, %p131
      %p134 = scmp.ne.s32.totalorder %s117, %s133
      %p135 = scmp.eq.s32.totalorder %s20, 0
      %p136 = por %p134, %p135
      %p137 = scmp.le.s32.totalorder 1, %s14
      %p138 = scmp.lt.s32.totalorder %s14, 3
      %p139 = pnand %p137, %p138
      %p140 = pneg %p139
      // Predicated region
      $region9: #{pinn_forward.1} parent=5 // pred_check
        _
      $region10: #{pinn_forward.1} parent=5 // pred_check_branch
        %142 = sbr.rel (%p139) target = $region12
      $region11: #{pinn_forward.1} parent=5 // pred_region
        %s143 = ssub.s32 %s14, 1
        // Predicated region
        $region13: #{pinn_forward.1} parent=11 // pred_check
          %p144 = pneg %p61
        $region14: #{pinn_forward.1} parent=11 // pred_check_branch
          %146 = sbr.rel (%p144) target = $region16
        $region15: #{pinn_forward.1} parent=11 // pred_region
          _
        $region16: #{pinn_forward.1} parent=11 // pred_fallthru
          _
        // Predicated region
        $region17: #{pinn_forward.1} parent=11 // pred_check
          %p147 = pneg %p82
        $region18: #{pinn_forward.1} parent=11 // pred_check_branch
          %149 = sbr.rel (%p147) target = $region20
        $region19: #{pinn_forward.1} parent=11 // pred_region
          _
        $region20: #{pinn_forward.1} parent=11 // pred_fallthru
          _
        // Predicated region
        $region21: #{pinn_forward.1} parent=11 // pred_check
          %p150 = pneg %p103
        $region22: #{pinn_forward.1} parent=11 // pred_check_branch
          %152 = sbr.rel (%p150) target = $region24
        $region23: #{pinn_forward.1} parent=11 // pred_region
          _
        $region24: #{pinn_forward.1} parent=11 // pred_fallthru
          _
      $region12: #{pinn_forward.1} parent=5 // pred_fallthru
        _
      %p153 = scmp.lt.s32.totalorder %s14, 2
      // Predicated region
      $region25: #{pinn_forward.1} parent=5 // pred_check
        %p154 = pneg %p153
      $region26: #{pinn_forward.1} parent=5 // pred_check_branch
        %156 = sbr.rel (%p154) target = $region28
      $region27: #{pinn_forward.1} parent=5 // pred_region
        // Predicated region
        $region29: #{pinn_forward.1} parent=27 // pred_check
          %p157 = pneg %p34
        $region30: #{pinn_forward.1} parent=27 // pred_check_branch
          %159 = sbr.rel (%p157) target = $region32
        $region31: #{pinn_forward.1} parent=27 // pred_region
          %p160 = scmp.lt.s32.totalorder %s14, 1
          %s161 = scalar_select %p160, %s14, 1
          %s162 = smul.addr %s161, 4
          %s163 = scalar_lea.vmem %s0, %s162
        $region32: #{pinn_forward.1} parent=27 // pred_fallthru
          _
      $region28: #{pinn_forward.1} parent=5 // pred_fallthru
        _
      %p164 = scmp.le.s32.totalorder 1, %s14
      %p165 = scmp.lt.s32.totalorder %s14, 3
      %p166 = pnand %p164, %p165
      %p167 = pneg %p166
      // Predicated region
      $region33: #{pinn_forward.1} parent=5 // pred_check
        _
      $region34: #{pinn_forward.1} parent=5 // pred_check_branch
        %169 = sbr.rel (%p166) target = $region36
      $region35: #{pinn_forward.1} parent=5 // pred_region
        %s170 = ssub.s32 %s14, 1
        %p171 = scmp.lt.s32.totalorder %s19, 1
        %s172 = scalar_select %p171, %s19, 1
        %s173 = smul.addr %s172, 4
        %s174 = scalar_lea.vmem %s0, %s173
        %p175 = pneg %p40
        %p176 = pneg %p37
        %p177 = pneg %p61
        %p178 = pneg %p58
        %p179 = pneg %p82
        %p180 = pneg %p79
        %p181 = pneg %p103
        %p182 = pneg %p100
        %p183 = pneg %p129
        %p184 = pneg %p126
        %s185 = sand.u32 %s116, 1
        %s186 = scalar_lea.sflag [#allocation4], %s185
        %s187 = sand.u32 %s116, 1
        %s188 = smul.addr %s187, 4
        %s189 = scalar_lea.vmem [#allocation3], %s188
        %p190 = scmp.lt.s32.totalorder %s19, 1
        %s191 = scalar_select %p190, %s19, 1
        %s192 = smul.addr %s191, 4
        %s193 = scalar_lea.vmem %s0, %s192
        %v194 = vld [vmem:[%s193] sm:$0xf]
        %v195 = vld [vmem:[%s1] sm:$0xff]
        %v196 = vld [vmem:[%s1 + $0x8] sm:$0xff]
        %v197 = vld [vmem:[%s1 + $0x10] sm:$0xff]
        %v198 = vld [vmem:[%s1 + $0x18] sm:$0xff]
        %v199 = vld [vmem:[%s1 + $0x20] sm:$0xff]
        %v200 = vld [vmem:[%s1 + $0x28] sm:$0xff]
        %v201 = vld [vmem:[%s1 + $0x30] sm:$0xff]
        %v202 = vld [vmem:[%s1 + $0x38] sm:$0xff]
        %204 = vset.pattern.permute.xlu0 0
        %205 = vperm.xlu0 %204, %v195
        %v206 = vpop.permute.xlu0 %205
        %209 = vset.pattern.permute.xlu0 0
        %210 = vperm.xlu0 %209, %v196
        %v211 = vpop.permute.xlu0 %210
        %214 = vset.pattern.permute.xlu0 0
        %215 = vperm.xlu0 %214, %v197
        %v216 = vpop.permute.xlu0 %215
        %219 = vset.pattern.permute.xlu0 0
        %220 = vperm.xlu0 %219, %v198
        %v221 = vpop.permute.xlu0 %220
        %224 = vset.pattern.permute.xlu0 0
        %225 = vperm.xlu0 %224, %v199
        %v226 = vpop.permute.xlu0 %225
        %229 = vset.pattern.permute.xlu0 0
        %230 = vperm.xlu0 %229, %v200
        %v231 = vpop.permute.xlu0 %230
        %234 = vset.pattern.permute.xlu0 0
        %235 = vperm.xlu0 %234, %v201
        %v236 = vpop.permute.xlu0 %235
        %239 = vset.pattern.permute.xlu0 0
        %240 = vperm.xlu0 %239, %v202
        %v241 = vpop.permute.xlu0 %240
        %v244 = vperm.slane %v194, 0
        %v245 = vperm.slane %v194, 1
        %v246 = vperm.slane %v194, 2
        %v247 = vperm.slane %v194, 3
        %v252 = vmul.f32 %v206, %v244
        %v253 = vmul.f32 %v206, %v245
        %v254 = vmul.f32 %v206, %v246
        %v255 = vmul.f32 %v206, %v247
        %v256 = vmul.f32 %v211, %v244
        %v257 = vmul.f32 %v211, %v245
        %v258 = vmul.f32 %v211, %v246
        %v259 = vmul.f32 %v211, %v247
        %v260 = vmul.f32 %v216, %v244
        %v261 = vmul.f32 %v216, %v245
        %v262 = vmul.f32 %v216, %v246
        %v263 = vmul.f32 %v216, %v247
        %v264 = vmul.f32 %v221, %v244
        %v265 = vmul.f32 %v221, %v245
        %v266 = vmul.f32 %v221, %v246
        %v267 = vmul.f32 %v221, %v247
        %v268 = vmul.f32 %v226, %v244
        %v269 = vmul.f32 %v226, %v245
        %v270 = vmul.f32 %v226, %v246
        %v271 = vmul.f32 %v226, %v247
        %v272 = vmul.f32 %v231, %v244
        %v273 = vmul.f32 %v231, %v245
        %v274 = vmul.f32 %v231, %v246
        %v275 = vmul.f32 %v231, %v247
        %v276 = vmul.f32 %v236, %v244
        %v277 = vmul.f32 %v236, %v245
        %v278 = vmul.f32 %v236, %v246
        %v279 = vmul.f32 %v236, %v247
        %v280 = vmul.f32 %v241, %v244
        %v281 = vmul.f32 %v241, %v245
        %v282 = vmul.f32 %v241, %v246
        %v283 = vmul.f32 %v241, %v247
        %284 = vset.pattern.permute.xlu0 1
        %285 = vperm.xlu0 %284, %v195
        %v286 = vpop.permute.xlu0 %285
        %288 = vset.pattern.permute.xlu0 1
        %289 = vperm.xlu0 %288, %v196
        %v290 = vpop.permute.xlu0 %289
        %292 = vset.pattern.permute.xlu0 1
        %293 = vperm.xlu0 %292, %v197
        %v294 = vpop.permute.xlu0 %293
        %296 = vset.pattern.permute.xlu0 1
        %297 = vperm.xlu0 %296, %v198
        %v298 = vpop.permute.xlu0 %297
        %300 = vset.pattern.permute.xlu0 1
        %301 = vperm.xlu0 %300, %v199
        %v302 = vpop.permute.xlu0 %301
        %304 = vset.pattern.permute.xlu0 1
        %305 = vperm.xlu0 %304, %v200
        %v306 = vpop.permute.xlu0 %305
        %308 = vset.pattern.permute.xlu0 1
        %309 = vperm.xlu0 %308, %v201
        %v310 = vpop.permute.xlu0 %309
        %312 = vset.pattern.permute.xlu0 1
        %313 = vperm.xlu0 %312, %v202
        %v314 = vpop.permute.xlu0 %313
        %v316 = vadd.f32 %v252, %v286
        %v317 = vadd.f32 %v253, %v286
        %v318 = vadd.f32 %v254, %v286
        %v319 = vadd.f32 %v255, %v286
        %v320 = vadd.f32 %v256, %v290
        %v321 = vadd.f32 %v257, %v290
        %v322 = vadd.f32 %v258, %v290
        %v323 = vadd.f32 %v259, %v290
        %v324 = vadd.f32 %v260, %v294
        %v325 = vadd.f32 %v261, %v294
        %v326 = vadd.f32 %v262, %v294
        %v327 = vadd.f32 %v263, %v294
        %v328 = vadd.f32 %v264, %v298
        %v329 = vadd.f32 %v265, %v298
        %v330 = vadd.f32 %v266, %v298
        %v331 = vadd.f32 %v267, %v298
        %v332 = vadd.f32 %v268, %v302
        %v333 = vadd.f32 %v269, %v302
        %v334 = vadd.f32 %v270, %v302
        %v335 = vadd.f32 %v271, %v302
        %v336 = vadd.f32 %v272, %v306
        %v337 = vadd.f32 %v273, %v306
        %v338 = vadd.f32 %v274, %v306
        %v339 = vadd.f32 %v275, %v306
        %v340 = vadd.f32 %v276, %v310
        %v341 = vadd.f32 %v277, %v310
        %v342 = vadd.f32 %v278, %v310
        %v343 = vadd.f32 %v279, %v310
        %v344 = vadd.f32 %v280, %v314
        %v345 = vadd.f32 %v281, %v314
        %v346 = vadd.f32 %v282, %v314
        %v347 = vadd.f32 %v283, %v314
        %v348 = vmax.f32 %v316, 0.0
        %v349 = vmax.f32 %v317, 0.0
        %v350 = vmax.f32 %v318, 0.0
        %v351 = vmax.f32 %v319, 0.0
        %v352 = vmax.f32 %v320, 0.0
        %v353 = vmax.f32 %v321, 0.0
        %v354 = vmax.f32 %v322, 0.0
        %v355 = vmax.f32 %v323, 0.0
        %v356 = vmax.f32 %v324, 0.0
        %v357 = vmax.f32 %v325, 0.0
        %v358 = vmax.f32 %v326, 0.0
        %v359 = vmax.f32 %v327, 0.0
        %v360 = vmax.f32 %v328, 0.0
        %v361 = vmax.f32 %v329, 0.0
        %v362 = vmax.f32 %v330, 0.0
        %v363 = vmax.f32 %v331, 0.0
        %v364 = vmax.f32 %v332, 0.0
        %v365 = vmax.f32 %v333, 0.0
        %v366 = vmax.f32 %v334, 0.0
        %v367 = vmax.f32 %v335, 0.0
        %v368 = vmax.f32 %v336, 0.0
        %v369 = vmax.f32 %v337, 0.0
        %v370 = vmax.f32 %v338, 0.0
        %v371 = vmax.f32 %v339, 0.0
        %v372 = vmax.f32 %v340, 0.0
        %v373 = vmax.f32 %v341, 0.0
        %v374 = vmax.f32 %v342, 0.0
        %v375 = vmax.f32 %v343, 0.0
        %v376 = vmax.f32 %v344, 0.0
        %v377 = vmax.f32 %v345, 0.0
        %v378 = vmax.f32 %v346, 0.0
        %v379 = vmax.f32 %v347, 0.0
        %v380 = vld [vmem:[%s2] sm:$0xff]
        %v381 = vld [vmem:[%s2 + $0x8] sm:$0xff]
        %v382 = vld [vmem:[%s2 + $0x10] sm:$0xff]
        %v383 = vld [vmem:[%s2 + $0x18] sm:$0xff]
        %v384 = vld [vmem:[%s2 + $0x20] sm:$0xff]
        %v385 = vld [vmem:[%s2 + $0x28] sm:$0xff]
        %v386 = vld [vmem:[%s2 + $0x30] sm:$0xff]
        %v387 = vld [vmem:[%s2 + $0x38] sm:$0xff]
        %388 = vset.pattern.permute.xlu0 2
        %389 = vperm.xlu0 %388, %v195
        %v390 = vpop.permute.xlu0 %389
        %392 = vset.pattern.permute.xlu0 2
        %393 = vperm.xlu0 %392, %v196
        %v394 = vpop.permute.xlu0 %393
        %396 = vset.pattern.permute.xlu0 2
        %397 = vperm.xlu0 %396, %v197
        %v398 = vpop.permute.xlu0 %397
        %400 = vset.pattern.permute.xlu0 2
        %401 = vperm.xlu0 %400, %v198
        %v402 = vpop.permute.xlu0 %401
        %404 = vset.pattern.permute.xlu0 2
        %405 = vperm.xlu0 %404, %v199
        %v406 = vpop.permute.xlu0 %405
        %408 = vset.pattern.permute.xlu0 2
        %409 = vperm.xlu0 %408, %v200
        %v410 = vpop.permute.xlu0 %409
        %412 = vset.pattern.permute.xlu0 2
        %413 = vperm.xlu0 %412, %v201
        %v414 = vpop.permute.xlu0 %413
        %416 = vset.pattern.permute.xlu0 2
        %417 = vperm.xlu0 %416, %v202
        %v418 = vpop.permute.xlu0 %417
        %vm420 = vcmask 523264
        %v422 = vsel %vm420, %v380, 0
        %v425 = vsel %vm420, %v381, 0
        %v428 = vsel %vm420, %v382, 0
        %v431 = vsel %vm420, %v383, 0
        %v434 = vsel %vm420, %v384, 0
        %v437 = vsel %vm420, %v385, 0
        %v440 = vsel %vm420, %v386, 0
        %v443 = vsel %vm420, %v387, 0
        %445 = vmatpush.msra.mxu0 0.0
        %446 = vmatpush.msra.mxu0 0.0
        %447 = vmatpush.msra.mxu0 0.0
        %448 = vmatpush.msra.mxu0 0.0
        %449 = vmatpush.msra.mxu0 0.0
        %450 = vmatpush.msra.mxu0 0.0
        %451 = vmatpush.msra.mxu0 0.0
        %452 = vmatpush.msra.mxu0 0.0
        %453 = vmatpush.msra.mxu0 %v376
        %454 = vmatpush.msra.mxu0 %v372
        %455 = vmatpush.msra.mxu0 %v368
        %456 = vmatpush.msra.mxu0 %v364
        %457 = vmatpush.msra.mxu0 %v360
        %458 = vmatpush.msra.mxu0 %v356
        %459 = vmatpush.msra.mxu0 %v352
        %460 = vmatpush.msra.mxu0 %v348
        %461 = vmatmul.f32.gmra.mxu0 %v422
        %v462 = vpop.f32.mrf.mxu0
        %v463 = vadd.f32 %v390, %v462
        %464 = vmatmul.f32.gmra.mxu0 %v425
        %v465 = vpop.f32.mrf.mxu0
        %v466 = vadd.f32 %v394, %v465
        %467 = vmatmul.f32.gmra.mxu0 %v428
        %v468 = vpop.f32.mrf.mxu0
        %v469 = vadd.f32 %v398, %v468
        %470 = vmatmul.f32.gmra.mxu0 %v431
        %v471 = vpop.f32.mrf.mxu0
        %v472 = vadd.f32 %v402, %v471
        %473 = vmatmul.f32.gmra.mxu0 %v434
        %v474 = vpop.f32.mrf.mxu0
        %v475 = vadd.f32 %v406, %v474
        %476 = vmatmul.f32.gmra.mxu0 %v437
        %v477 = vpop.f32.mrf.mxu0
        %v478 = vadd.f32 %v410, %v477
        %479 = vmatmul.f32.gmra.mxu0 %v440
        %v480 = vpop.f32.mrf.mxu0
        %v481 = vadd.f32 %v414, %v480
        %482 = vmatmul.f32.gmra.mxu0 %v443
        %v483 = vpop.f32.mrf.mxu0
        %v484 = vadd.f32 %v418, %v483
        %485 = vdwg.mxu0
        %486 = vmatpush.msra.mxu0 0.0
        %487 = vmatpush.msra.mxu0 0.0
        %488 = vmatpush.msra.mxu0 0.0
        %489 = vmatpush.msra.mxu0 0.0
        %490 = vmatpush.msra.mxu0 0.0
        %491 = vmatpush.msra.mxu0 0.0
        %492 = vmatpush.msra.mxu0 0.0
        %493 = vmatpush.msra.mxu0 0.0
        %494 = vmatpush.msra.mxu0 %v377
        %495 = vmatpush.msra.mxu0 %v373
        %496 = vmatpush.msra.mxu0 %v369
        %497 = vmatpush.msra.mxu0 %v365
        %498 = vmatpush.msra.mxu0 %v361
        %499 = vmatpush.msra.mxu0 %v357
        %500 = vmatpush.msra.mxu0 %v353
        %501 = vmatpush.msra.mxu0 %v349
        %502 = vmatmul.f32.gmra.mxu0 %v422
        %v503 = vpop.f32.mrf.mxu0
        %v504 = vadd.f32 %v390, %v503
        %505 = vmatmul.f32.gmra.mxu0 %v425
        %v506 = vpop.f32.mrf.mxu0
        %v507 = vadd.f32 %v394, %v506
        %508 = vmatmul.f32.gmra.mxu0 %v428
        %v509 = vpop.f32.mrf.mxu0
        %v510 = vadd.f32 %v398, %v509
        %511 = vmatmul.f32.gmra.mxu0 %v431
        %v512 = vpop.f32.mrf.mxu0
        %v513 = vadd.f32 %v402, %v512
        %514 = vmatmul.f32.gmra.mxu0 %v434
        %v515 = vpop.f32.mrf.mxu0
        %v516 = vadd.f32 %v406, %v515
        %517 = vmatmul.f32.gmra.mxu0 %v437
        %v518 = vpop.f32.mrf.mxu0
        %v519 = vadd.f32 %v410, %v518
        %520 = vmatmul.f32.gmra.mxu0 %v440
        %v521 = vpop.f32.mrf.mxu0
        %v522 = vadd.f32 %v414, %v521
        %523 = vmatmul.f32.gmra.mxu0 %v443
        %v524 = vpop.f32.mrf.mxu0
        %v525 = vadd.f32 %v418, %v524
        %526 = vdwg.mxu0
        %527 = vmatpush.msra.mxu0 0.0
        %528 = vmatpush.msra.mxu0 0.0
        %529 = vmatpush.msra.mxu0 0.0
        %530 = vmatpush.msra.mxu0 0.0
        %531 = vmatpush.msra.mxu0 0.0
        %532 = vmatpush.msra.mxu0 0.0
        %533 = vmatpush.msra.mxu0 0.0
        %534 = vmatpush.msra.mxu0 0.0
        %535 = vmatpush.msra.mxu0 %v378
        %536 = vmatpush.msra.mxu0 %v374
        %537 = vmatpush.msra.mxu0 %v370
        %538 = vmatpush.msra.mxu0 %v366
        %539 = vmatpush.msra.mxu0 %v362
        %540 = vmatpush.msra.mxu0 %v358
        %541 = vmatpush.msra.mxu0 %v354
        %542 = vmatpush.msra.mxu0 %v350
        %543 = vmatmul.f32.gmra.mxu0 %v422
        %v544 = vpop.f32.mrf.mxu0
        %v545 = vadd.f32 %v390, %v544
        %546 = vmatmul.f32.gmra.mxu0 %v425
        %v547 = vpop.f32.mrf.mxu0
        %v548 = vadd.f32 %v394, %v547
        %549 = vmatmul.f32.gmra.mxu0 %v428
        %v550 = vpop.f32.mrf.mxu0
        %v551 = vadd.f32 %v398, %v550
        %552 = vmatmul.f32.gmra.mxu0 %v431
        %v553 = vpop.f32.mrf.mxu0
        %v554 = vadd.f32 %v402, %v553
        %555 = vmatmul.f32.gmra.mxu0 %v434
        %v556 = vpop.f32.mrf.mxu0
        %v557 = vadd.f32 %v406, %v556
        %558 = vmatmul.f32.gmra.mxu0 %v437
        %v559 = vpop.f32.mrf.mxu0
        %v560 = vadd.f32 %v410, %v559
        %561 = vmatmul.f32.gmra.mxu0 %v440
        %v562 = vpop.f32.mrf.mxu0
        %v563 = vadd.f32 %v414, %v562
        %564 = vmatmul.f32.gmra.mxu0 %v443
        %v565 = vpop.f32.mrf.mxu0
        %v566 = vadd.f32 %v418, %v565
        %567 = vdwg.mxu0
        %568 = vmatpush.msra.mxu0 0.0
        %569 = vmatpush.msra.mxu0 0.0
        %570 = vmatpush.msra.mxu0 0.0
        %571 = vmatpush.msra.mxu0 0.0
        %572 = vmatpush.msra.mxu0 0.0
        %573 = vmatpush.msra.mxu0 0.0
        %574 = vmatpush.msra.mxu0 0.0
        %575 = vmatpush.msra.mxu0 0.0
        %576 = vmatpush.msra.mxu0 %v379
        %577 = vmatpush.msra.mxu0 %v375
        %578 = vmatpush.msra.mxu0 %v371
        %579 = vmatpush.msra.mxu0 %v367
        %580 = vmatpush.msra.mxu0 %v363
        %581 = vmatpush.msra.mxu0 %v359
        %582 = vmatpush.msra.mxu0 %v355
        %583 = vmatpush.msra.mxu0 %v351
        %584 = vmatmul.f32.gmra.mxu0 %v422
        %v585 = vpop.f32.mrf.mxu0
        %v586 = vadd.f32 %v390, %v585
        %587 = vmatmul.f32.gmra.mxu0 %v425
        %v588 = vpop.f32.mrf.mxu0
        %v589 = vadd.f32 %v394, %v588
        %590 = vmatmul.f32.gmra.mxu0 %v428
        %v591 = vpop.f32.mrf.mxu0
        %v592 = vadd.f32 %v398, %v591
        %593 = vmatmul.f32.gmra.mxu0 %v431
        %v594 = vpop.f32.mrf.mxu0
        %v595 = vadd.f32 %v402, %v594
        %596 = vmatmul.f32.gmra.mxu0 %v434
        %v597 = vpop.f32.mrf.mxu0
        %v598 = vadd.f32 %v406, %v597
        %599 = vmatmul.f32.gmra.mxu0 %v437
        %v600 = vpop.f32.mrf.mxu0
        %v601 = vadd.f32 %v410, %v600
        %602 = vmatmul.f32.gmra.mxu0 %v440
        %v603 = vpop.f32.mrf.mxu0
        %v604 = vadd.f32 %v414, %v603
        %605 = vmatmul.f32.gmra.mxu0 %v443
        %v606 = vpop.f32.mrf.mxu0
        %v607 = vadd.f32 %v418, %v606
        %608 = vdwg.mxu0
        %v609 = vmax.f32 %v463, 0.0
        %v610 = vmax.f32 %v504, 0.0
        %v611 = vmax.f32 %v545, 0.0
        %v612 = vmax.f32 %v586, 0.0
        %v613 = vmax.f32 %v466, 0.0
        %v614 = vmax.f32 %v507, 0.0
        %v615 = vmax.f32 %v548, 0.0
        %v616 = vmax.f32 %v589, 0.0
        %v617 = vmax.f32 %v469, 0.0
        %v618 = vmax.f32 %v510, 0.0
        %v619 = vmax.f32 %v551, 0.0
        %v620 = vmax.f32 %v592, 0.0
        %v621 = vmax.f32 %v472, 0.0
        %v622 = vmax.f32 %v513, 0.0
        %v623 = vmax.f32 %v554, 0.0
        %v624 = vmax.f32 %v595, 0.0
        %v625 = vmax.f32 %v475, 0.0
        %v626 = vmax.f32 %v516, 0.0
        %v627 = vmax.f32 %v557, 0.0
        %v628 = vmax.f32 %v598, 0.0
        %v629 = vmax.f32 %v478, 0.0
        %v630 = vmax.f32 %v519, 0.0
        %v631 = vmax.f32 %v560, 0.0
        %v632 = vmax.f32 %v601, 0.0
        %v633 = vmax.f32 %v481, 0.0
        %v634 = vmax.f32 %v522, 0.0
        %v635 = vmax.f32 %v563, 0.0
        %v636 = vmax.f32 %v604, 0.0
        %v637 = vmax.f32 %v484, 0.0
        %v638 = vmax.f32 %v525, 0.0
        %v639 = vmax.f32 %v566, 0.0
        %v640 = vmax.f32 %v607, 0.0
        %641 = vset.pattern.permute.xlu0 3
        %642 = vperm.xlu0 %641, %v195
        %v643 = vpop.permute.xlu0 %642
        %645 = vset.pattern.permute.xlu0 3
        %646 = vperm.xlu0 %645, %v196
        %v647 = vpop.permute.xlu0 %646
        %649 = vset.pattern.permute.xlu0 3
        %650 = vperm.xlu0 %649, %v197
        %v651 = vpop.permute.xlu0 %650
        %653 = vset.pattern.permute.xlu0 3
        %654 = vperm.xlu0 %653, %v198
        %v655 = vpop.permute.xlu0 %654
        %657 = vset.pattern.permute.xlu0 3
        %658 = vperm.xlu0 %657, %v199
        %v659 = vpop.permute.xlu0 %658
        %661 = vset.pattern.permute.xlu0 3
        %662 = vperm.xlu0 %661, %v200
        %v663 = vpop.permute.xlu0 %662
        %665 = vset.pattern.permute.xlu0 3
        %666 = vperm.xlu0 %665, %v201
        %v667 = vpop.permute.xlu0 %666
        %669 = vset.pattern.permute.xlu0 3
        %670 = vperm.xlu0 %669, %v202
        %v671 = vpop.permute.xlu0 %670
        %v673 = vmul.f32 %v609, %v643
        %v674 = vmul.f32 %v610, %v643
        %v675 = vmul.f32 %v611, %v643
        %v676 = vmul.f32 %v612, %v643
        %v677 = vmul.f32 %v613, %v647
        %v678 = vmul.f32 %v614, %v647
        %v679 = vmul.f32 %v615, %v647
        %v680 = vmul.f32 %v616, %v647
        %v681 = vmul.f32 %v617, %v651
        %v682 = vmul.f32 %v618, %v651
        %v683 = vmul.f32 %v619, %v651
        %v684 = vmul.f32 %v620, %v651
        %v685 = vmul.f32 %v621, %v655
        %v686 = vmul.f32 %v622, %v655
        %v687 = vmul.f32 %v623, %v655
        %v688 = vmul.f32 %v624, %v655
        %v689 = vmul.f32 %v625, %v659
        %v690 = vmul.f32 %v626, %v659
        %v691 = vmul.f32 %v627, %v659
        %v692 = vmul.f32 %v628, %v659
        %v693 = vmul.f32 %v629, %v663
        %v694 = vmul.f32 %v630, %v663
        %v695 = vmul.f32 %v631, %v663
        %v696 = vmul.f32 %v632, %v663
        %v697 = vmul.f32 %v633, %v667
        %v698 = vmul.f32 %v634, %v667
        %v699 = vmul.f32 %v635, %v667
        %v700 = vmul.f32 %v636, %v667
        %v701 = vmul.f32 %v637, %v671
        %v702 = vmul.f32 %v638, %v671
        %v703 = vmul.f32 %v639, %v671
        %v704 = vmul.f32 %v640, %v671
        %v705 = vadd.f32 %v673, %v677
        %v706 = vadd.f32 %v705, %v681
        %v707 = vadd.f32 %v706, %v685
        %v708 = vadd.f32 %v707, %v689
        %v709 = vadd.f32 %v708, %v693
        %v710 = vadd.f32 %v709, %v697
        %v711 = vadd.f32 %v710, %v701
        %v712 = vrot.slane %v711, 4
        %v713 = vadd.f32 %v711, %v712
        %v714 = vrot.slane %v713, 2
        %v715 = vadd.f32 %v713, %v714
        %v716 = vrot.slane %v715, 1
        %v717 = vadd.f32 %v715, %v716
        %v718 = vadd.f32 %v674, %v678
        %v719 = vadd.f32 %v718, %v682
        %v720 = vadd.f32 %v719, %v686
        %v721 = vadd.f32 %v720, %v690
        %v722 = vadd.f32 %v721, %v694
        %v723 = vadd.f32 %v722, %v698
        %v724 = vadd.f32 %v723, %v702
        %v725 = vrot.slane %v724, 4
        %v726 = vadd.f32 %v724, %v725
        %v727 = vrot.slane %v726, 2
        %v728 = vadd.f32 %v726, %v727
        %v729 = vrot.slane %v728, 1
        %v730 = vadd.f32 %v728, %v729
        %v731 = vadd.f32 %v675, %v679
        %v732 = vadd.f32 %v731, %v683
        %v733 = vadd.f32 %v732, %v687
        %v734 = vadd.f32 %v733, %v691
        %v735 = vadd.f32 %v734, %v695
        %v736 = vadd.f32 %v735, %v699
        %v737 = vadd.f32 %v736, %v703
        %v738 = vrot.slane %v737, 4
        %v739 = vadd.f32 %v737, %v738
        %v740 = vrot.slane %v739, 2
        %v741 = vadd.f32 %v739, %v740
        %v742 = vrot.slane %v741, 1
        %v743 = vadd.f32 %v741, %v742
        %v744 = vadd.f32 %v676, %v680
        %v745 = vadd.f32 %v744, %v684
        %v746 = vadd.f32 %v745, %v688
        %v747 = vadd.f32 %v746, %v692
        %v748 = vadd.f32 %v747, %v696
        %v749 = vadd.f32 %v748, %v700
        %v750 = vadd.f32 %v749, %v704
        %v751 = vrot.slane %v750, 4
        %v752 = vadd.f32 %v750, %v751
        %v753 = vrot.slane %v752, 2
        %v754 = vadd.f32 %v752, %v753
        %v755 = vrot.slane %v754, 1
        %v756 = vadd.f32 %v754, %v755
        %s757 = sld [smem:[#allocation2]]
        %v758 = vstv %s757
        %v759 = vadd.f32 %v717, %v758
        %v760 = vadd.f32 %v730, %v758
        %v761 = vadd.f32 %v743, %v758
        %v762 = vadd.f32 %v756, %v758
        %v767 = vrot.slane %v760, 7
        %v768 = vrot.slane %v761, 6
        %v769 = vrot.slane %v762, 5
        %vm770 = vcmask 1040384
        %v771 = vsel %vm770, %v759, %v767
        %vm772 = vcmask 1042434
        %v773 = vsel %vm772, %v768, %v769
        %vm774 = vcmask 1041408
        %v775 = vsel %vm774, %v771, %v773
        %v777 = vlaneseq
        %vm778 = vcmp.ge.s32.totalorder %v777, 0
        %vm779 = vcmp.lt.s32.totalorder %v777, 512
        %vm780 = vmand %vm778, %vm779
        %781 = vst.msk [vmem:[%s189] sm:$0xf] %vm780, %v775
        %s782 = sand.u32 %s116, 1
        %s783 = scalar_lea.sflag [#allocation4], %s782
        %s784 = sand.u32 %s116, 1
        %s785 = smul.addr %s784, 4
        %s786 = scalar_lea.vmem [#allocation3], %s785
        // Predicated region
        $region37: #{pinn_forward.1} parent=35 // pred_check
          %p787 = pneg %p126
        $region38: #{pinn_forward.1} parent=35 // pred_check_branch
          %789 = sbr.rel (%p787) target = $region40
        $region39: #{pinn_forward.1} parent=35 // pred_region
          %791 = vsyncadd %s783, 0
          %s792 = smul.addr %s19, 4
          %s793 = scalar_lea.hbm %s4, %s792
          %s795 = sshll.u32 %s786, 4
          %s796 = int_to_ptr.vmem [resolvable:$true] %s795
          %s797 = sshll.u32 %s793, 4
          %s798 = int_to_ptr.hbm [resolvable:$true] %s797
          %800 = dma.vmem_to_hbm [thread:$0]  %s796, 64, %s798, %s783
        $region40: #{pinn_forward.1} parent=35 // pred_fallthru
          _
      $region36: #{pinn_forward.1} parent=5 // pred_fallthru
        _
      %p801 = scmp.le.s32.totalorder 2, %s14
      // Predicated region
      $region41: #{pinn_forward.1} parent=5 // pred_check
        %p802 = pneg %p801
      $region42: #{pinn_forward.1} parent=5 // pred_check_branch
        %804 = sbr.rel (%p802) target = $region44
      $region43: #{pinn_forward.1} parent=5 // pred_region
        %s805 = ssub.s32 %s14, 2
        // Predicated region
        $region45: #{pinn_forward.1} parent=43 // pred_check
          %p806 = pneg %p132
        $region46: #{pinn_forward.1} parent=43 // pred_check_branch
          %808 = sbr.rel (%p806) target = $region48
        $region47: #{pinn_forward.1} parent=43 // pred_region
          %s809 = sand.u32 %s117, 1
          %s810 = scalar_lea.sflag [#allocation4], %s809
          %s811 = sand.u32 %s117, 1
          %s812 = smul.addr %s811, 4
          %s813 = scalar_lea.vmem [#allocation3], %s812
          %815 = dma.done %s810, 64
        $region48: #{pinn_forward.1} parent=43 // pred_fallthru
          _
      $region44: #{pinn_forward.1} parent=5 // pred_fallthru
        _
    $region6: #{pinn_forward.1} parent=1 // loop_footer
      %s18 = sadd.s32 1, %s14
    $region7: #{pinn_forward.1} parent=1 // loop_footer_branch
      %13 = sbr.rel target = $region3
    $region8: #{pinn_forward.1} parent=1 // loop_exit
      _
    %816 = vsyncpa [#allocation4], 1
    %s817 = scalar_lea.sflag [#allocation4], 1
    %818 = vsyncpa %s817, 1

</llo_original>
